<compile_context>
chip_gen: v5e
topology: v5e:2x2
jax: 0.10.0
libtpu: 0.0.40
codegen_flags: <defaults>
</compile_context>

<pallas_src>
import functools
import math

import jax
import jax.numpy as jnp
from jax.experimental import pallas as pl
from jax.experimental.pallas import tpu as pltpu


# ---------------- tiling helpers ----------------

def _pick_tile(dim, preferred, align):
    """Largest tile t <= preferred with t % align == 0 and dim % t == 0, else the full dim."""
    if dim <= preferred:
        return dim
    t = (preferred // align) * align
    while t >= align:
        if dim % t == 0:
            return t
        t -= align
    # TODO(synk): no aligned divisor -> full-dim block (pad+mask along the kv axis not
    # implemented); only reachable for pathological sequence lengths.
    return dim


def _tile_pad(dim, preferred, align):
    """(tile, padded_dim).  Like _pick_tile, but pads the axis instead of silently
    falling back to a full-dim block, so no oversized VMEM block can be created."""
    if dim <= preferred:
        return dim, dim
    t = (preferred // align) * align
    tt = t
    while tt >= align:
        if dim % tt == 0:
            return tt, dim
        tt -= align
    return t, pl.cdiv(dim, t) * t


def _head_group(heads, head_dim, tq, tk, itemsize, budget_bytes=16 * 1024 * 1024):
    """Largest #heads per group whose fused width is a 128-lane multiple and whose
    double-buffered q/k/v/out blocks + f32 scratch fit the VMEM budget."""
    aligned = [g for g in range(1, heads + 1)
               if heads % g == 0 and (g * head_dim) % 128 == 0]
    assert aligned, "caller must ensure inner % 128 == 0 (pad head_dim otherwise)"
    best = aligned[0]
    for g in aligned:
        gw = g * head_dim
        blocks = 2 * itemsize * (2 * tq * gw + 2 * tk * gw)   # q,out + k,v, double-buffered
        scratch = 4 * (tq * gw + 2 * g * tq)                  # f32 acc + m/l
        if blocks + scratch <= budget_bytes:
            best = g
    return best


def _padded_head_dim(heads, head_dim):
    """Smallest head_dim' >= head_dim with (heads*head_dim') % 128 == 0."""
    step = 128 // math.gcd(heads, 128)
    return pl.cdiv(head_dim, step) * step


# ---------------- tiled linear: y = x @ W (+ b) ----------------

def _linear_kernel(x_ref, w_ref, o_ref, acc_ref):
    k = pl.program_id(2)

    @pl.when(k == 0)
    def _():
        acc_ref[...] = jnp.zeros(acc_ref.shape, acc_ref.dtype)

    acc_ref[...] += jnp.dot(
        x_ref[...].astype(jnp.bfloat16),
        w_ref[...].astype(jnp.bfloat16),
        preferred_element_type=jnp.float32)

    @pl.when(k == pl.num_programs(2) - 1)
    def _():
        o_ref[...] = acc_ref[...].astype(o_ref.dtype)


def _linear_bias_kernel(x_ref, w_ref, b_ref, o_ref, acc_ref):
    k = pl.program_id(2)

    @pl.when(k == 0)
    def _():
        acc_ref[...] = jnp.zeros(acc_ref.shape, acc_ref.dtype)

    acc_ref[...] += jnp.dot(
        x_ref[...].astype(jnp.bfloat16),
        w_ref[...].astype(jnp.bfloat16),
        preferred_element_type=jnp.float32)

    @pl.when(k == pl.num_programs(2) - 1)
    def _():
        o_ref[...] = (acc_ref[...] + b_ref[...].astype(jnp.float32)).astype(o_ref.dtype)


def linear(x, w, b=None, *, out_dtype=None, tm_pref=512, tn_pref=512, tk_pref=512):
    """x: (B, N, Din) @ w: (Din, Dout) (+ b) -> (B, N, Dout).
    bf16 MXU operands, f32 accumulation; output dtype selectable (bf16 for activations)."""
    B, N, Din = x.shape
    Dout = w.shape[1]
    M = B * N
    out_dtype = x.dtype if out_dtype is None else out_dtype
    x2 = x.reshape(M, Din)  # contiguous reshape: metadata only

    # 16-sublane alignment works for both f32 and bf16 blocks.
    tm, Mp = _tile_pad(M, tm_pref, 16)
    tn, Np = _tile_pad(Dout, tn_pref, 128)
    tk, Kp = _tile_pad(Din, tk_pref, 128)

    if Mp != M:
        x2 = jnp.pad(x2, ((0, Mp - M), (0, 0)))
    if Kp != Din:
        x2 = jnp.pad(x2, ((0, 0), (0, Kp - Din)))
        w = jnp.pad(w, ((0, Kp - Din), (0, 0)))
    if Np != Dout:
        w = jnp.pad(w, ((0, 0), (0, Np - Dout)))
        if b is not None:
            b = jnp.pad(b, (0, Np - Dout))

    grid = (Mp // tm, Np // tn, Kp // tk)
    x_spec = pl.BlockSpec((tm, tk), lambda i, j, k: (i, k))
    w_spec = pl.BlockSpec((tk, tn), lambda i, j, k: (k, j))
    o_spec = pl.BlockSpec((tm, tn), lambda i, j, k: (i, j))
    out_shape = jax.ShapeDtypeStruct((Mp, Np), out_dtype)
    scratch = [pltpu.VMEM((tm, tn), jnp.float32)]
    cparams = pltpu.CompilerParams(
        dimension_semantics=("parallel", "parallel", "arbitrary"))

    if b is None:
        y = pl.pallas_call(
            _linear_kernel, out_shape=out_shape, grid=grid,
            in_specs=[x_spec, w_spec], out_specs=o_spec,
            scratch_shapes=scratch, compiler_params=cparams,
        )(x2, w)
    else:
        b2 = b.reshape(1, Np)
        b_spec = pl.BlockSpec((1, tn), lambda i, j, k: (0, j))
        y = pl.pallas_call(
            _linear_bias_kernel, out_shape=out_shape, grid=grid,
            in_specs=[x_spec, w_spec, b_spec], out_specs=o_spec,
            scratch_shapes=scratch, compiler_params=cparams,
        )(x2, w, b2)

    if Mp != M or Np != Dout:
        y = y[:M, :Dout]
    return y.reshape(B, N, Dout)


# ---------------- flash-style multi-head attention over the fused qkv tensor ----------------

def _flash_mha_kernel(q_ref, k_ref, v_ref, o_ref, m_sc, l_sc, acc_sc, *,
                      g_heads, head_dim):
    ki = pl.program_id(3)

    @pl.when(ki == 0)
    def _():
        m_sc[...] = jnp.full(m_sc.shape, -jnp.inf, dtype=m_sc.dtype)
        l_sc[...] = jnp.zeros(l_sc.shape, l_sc.dtype)
        acc_sc[...] = jnp.zeros(acc_sc.shape, acc_sc.dtype)

    # Whole lane-aligned head-group blocks; scale is already folded into the qkv weights.
    q_all = q_ref[0]  # (tq, gw) bf16
    k_all = k_ref[0]  # (tk, gw) bf16
    v_all = v_ref[0]  # (tk, gw) bf16

    pv_parts = []
    alpha_parts = []
    for h in range(g_heads):  # static unroll over the heads in this group
        lo, hi = h * head_dim, (h + 1) * head_dim
        q = q_all[:, lo:hi]
        k = k_all[:, lo:hi]
        v = v_all[:, lo:hi]

        # s = q @ k^T on the MXU, f32 accumulation
        s = jax.lax.dot_general(q, k, (((1,), (1,)), ((), ())),
                                preferred_element_type=jnp.float32)      # (tq, tk) f32

        m_prev = m_sc[h]                                                 # (tq, 1)
        m_new = jnp.maximum(m_prev, jnp.max(s, axis=-1, keepdims=True))
        alpha = jnp.exp(m_prev - m_new)                                  # f32, per-row
        # bf16 softmax numerator: bf16 exp (EUP-bf16 on v6e/v7x) feeds the PV matmul directly
        p = jnp.exp((s - m_new).astype(jnp.bfloat16))                    # (tq, tk) bf16
        l_sc[h] = alpha * l_sc[h] + jnp.sum(p.astype(jnp.float32), axis=-1, keepdims=True)
        m_sc[h] = m_new

        pv_parts.append(jnp.dot(p, v, preferred_element_type=jnp.float32))   # (tq, d)
        alpha_parts.append(jnp.broadcast_to(alpha, (alpha.shape[0], head_dim)))

    pv = pv_parts[0] if g_heads == 1 else jnp.concatenate(pv_parts, axis=-1)
    alpha_all = alpha_parts[0] if g_heads == 1 else jnp.concatenate(alpha_parts, axis=-1)
    # single lane-dense (tq, gw) read-modify-write of the accumulator slab per kv step
    acc_sc[...] = alpha_all * acc_sc[...] + pv

    @pl.when(ki == pl.num_programs(3) - 1)
    def _():
        inv_parts = []
        for h in range(g_heads):
            inv = pl.reciprocal(l_sc[h], approx=True)   # EUP slot, effectively free
            inv_parts.append(jnp.broadcast_to(inv, (inv.shape[0], head_dim)))
        inv_all = inv_parts[0] if g_heads == 1 else jnp.concatenate(inv_parts, axis=-1)
        # lane-dense write of the whole head group, already in 'b n (h d)' layout
        o_ref[0] = (acc_sc[...] * inv_all).astype(o_ref.dtype)


def multihead_attention(qkv, *, heads, head_dim, tq_pref=512, tk_pref=256):
    """qkv: (B, N, 3*heads*head_dim) laid out as [q | k | v], each 'n (h d)', bf16.
    Softmax scale must already be folded into the q columns.  Returns (B, N, heads*head_dim)."""
    B, N, W = qkv.shape
    inner = heads * head_dim
    assert W == 3 * inner

    if inner % 128 != 0:
        # No 128-lane-aligned head group exists: zero-pad head_dim (QK^T and PV are
        # unchanged by zero pads along head_dim), run the aligned kernel, slice the pad off.
        dh_pad = _padded_head_dim(heads, head_dim)
        qkv5 = qkv.reshape(B, N, 3, heads, head_dim)
        qkv5 = jnp.pad(qkv5, ((0, 0), (0, 0), (0, 0), (0, 0), (0, dh_pad - head_dim)))
        qkv_p = qkv5.reshape(B, N, 3 * heads * dh_pad)
        out_p = multihead_attention(qkv_p, heads=heads, head_dim=dh_pad,
                                    tq_pref=tq_pref, tk_pref=tk_pref)
        return out_p.reshape(B, N, heads, dh_pad)[..., :head_dim].reshape(B, N, inner)

    tq = _pick_tile(N, tq_pref, 16)
    tk = _pick_tile(N, tk_pref, 16)

    g = _head_group(heads, head_dim, tq, tk, qkv.dtype.itemsize)
    hg = heads // g
    gw = g * head_dim  # lane-aligned (multiple of 128) fused head-group width

    q_spec = pl.BlockSpec((1, tq, gw), lambda b, gi, qi, ki: (b, qi, gi))
    k_spec = pl.BlockSpec((1, tk, gw), lambda b, gi, qi, ki: (b, ki, hg + gi))
    v_spec = pl.BlockSpec((1, tk, gw), lambda b, gi, qi, ki: (b, ki, 2 * hg + gi))
    o_spec = pl.BlockSpec((1, tq, gw), lambda b, gi, qi, ki: (b, qi, gi))

    grid = (B, hg, N // tq, N // tk)
    kernel = functools.partial(_flash_mha_kernel, g_heads=g, head_dim=head_dim)

    return pl.pallas_call(
        kernel,
        out_shape=jax.ShapeDtypeStruct((B, N, inner), qkv.dtype),
        grid=grid,
        in_specs=[q_spec, k_spec, v_spec],
        out_specs=o_spec,
        scratch_shapes=[
            pltpu.VMEM((g, tq, 1), jnp.float32),   # running max per head
            pltpu.VMEM((g, tq, 1), jnp.float32),   # running sum per head
            pltpu.VMEM((tq, gw), jnp.float32),     # lane-dense output accumulator slab
        ],
        compiler_params=pltpu.CompilerParams(
            dimension_semantics=("parallel", "parallel", "parallel", "arbitrary")),
    )(qkv, qkv, qkv)


# ---------------- Attention module (forward pass) ----------------

class Attention:
    """Pallas/TPU forward of the PyTorch Attention module (mask=None, dropout p=0.0)."""

    def __init__(self, dim, heads=8, head_dim=64, dropout=0.0, *, key,
                 q_block=512, kv_block=256, m_block=512):
        inner_dim = head_dim * heads
        self.heads = heads
        self.head_dim = head_dim
        self.dim = dim
        self.scale = head_dim ** (-0.5)
        self.project_out = not (heads == 1 and head_dim == dim)
        self.q_block = q_block
        self.kv_block = kv_block
        self.m_block = m_block
        k1, k2, k3 = jax.random.split(key, 3)
        # f32 master parameters (PyTorch-Linear-style uniform init), stored as (in, out)
        bound_qkv = 1.0 / (dim ** 0.5)
        self.w_qkv = jax.random.uniform(
            k1, (dim, inner_dim * 3), jnp.float32, -bound_qkv, bound_qkv)
        # kernel weights: bf16 storage, softmax scale folded into the Q columns
        self.w_qkv_k = self.w_qkv.at[:, :inner_dim].multiply(self.scale).astype(jnp.bfloat16)
        if self.project_out:
            bound_out = 1.0 / (inner_dim ** 0.5)
            self.w_out = jax.random.uniform(
                k2, (inner_dim, dim), jnp.float32, -bound_out, bound_out)
            self.b_out = jax.random.uniform(
                k3, (dim,), jnp.float32, -bound_out, bound_out)
            self.w_out_k = self.w_out.astype(jnp.bfloat16)
        else:
            self.w_out = self.b_out = self.w_out_k = None
        # TODO(synk): mask path (masked_fill with -finfo.max), return_attn_weights and
        # nonzero dropout are not implemented; forward covers the default arguments.

    def __call__(self, x):
        # qkv projection: bf16 activations out (halves the HBM write + flash-kernel re-reads)
        qkv = linear(x, self.w_qkv_k, out_dtype=jnp.bfloat16, tm_pref=self.m_block)
        out = multihead_attention(                      # (B, N, inner) bf16, heads merged
            qkv, heads=self.heads, head_dim=self.head_dim,
            tq_pref=self.q_block, tk_pref=self.kv_block)
        if self.project_out:
            out = linear(out, self.w_out_k, self.b_out, out_dtype=x.dtype,
                         tm_pref=self.m_block)          # (B, N, dim) in the input dtype
        else:
            out = out.astype(x.dtype)
        return out


# ---------------- reference (pure jnp, f32) for verification ----------------

def reference_forward(attn_mod, x):
    B, N, _ = x.shape
    H, Dh = attn_mod.heads, attn_mod.head_dim
    qkv = x @ attn_mod.w_qkv
    q, k, v = jnp.split(qkv, 3, axis=-1)

    def to_heads(t):
        return jnp.transpose(t.reshape(B, N, H, Dh), (0, 2, 1, 3))

    q, k, v = map(to_heads, (q, k, v))
    dots = jnp.einsum('bhid,bhjd->bhij', q, k) * attn_mod.scale
    p = jax.nn.softmax(dots, axis=-1)
    out = jnp.einsum('bhij,bhjd->bhid', p, v)
    out = jnp.transpose(out, (0, 2, 1, 3)).reshape(B, N, H * Dh)
    if attn_mod.project_out:
        out = out @ attn_mod.w_out + attn_mod.b_out
    return out


if __name__ == "__main__":
    key = jax.random.PRNGKey(0)
    k_p1, k_x1, k_p2, k_x2, k_p3, k_x3 = jax.random.split(key, 6)

    # bf16 weights/activations + approx reciprocal: intentionally looser tolerance vs f32 ref.
    TOL = 4e-2

    # Case 1: module defaults (heads=8, head_dim=64) at small batch/seq/dim.
    B, N, DIM = 2, 8, 32
    mod = Attention(DIM, heads=8, head_dim=64, dropout=0.0, key=k_p1)
    x = jax.random.normal(k_x1, (B, N, DIM), jnp.float32)
    out = jax.block_until_ready(mod(x))
    ref = reference_forward(mod, x)
    assert out.shape == (B, N, DIM), out.shape
    assert jnp.allclose(out, ref, atol=TOL, rtol=TOL), float(jnp.max(jnp.abs(out - ref)))

    # Case 2: small tiles force multiple q-tiles and kv-tiles to exercise the
    # online-softmax accumulation across the kv ("arbitrary") grid axis.
    B2, N2, DIM2 = 1, 128, 32
    mod2 = Attention(DIM2, heads=4, head_dim=64, dropout=0.0, key=k_p2,
                     q_block=64, kv_block=32)
    x2 = jax.random.normal(k_x2, (B2, N2, DIM2), jnp.float32)
    out2 = jax.block_until_ready(mod2(x2))
    ref2 = reference_forward(mod2, x2)
    assert out2.shape == (B2, N2, DIM2), out2.shape
    assert jnp.allclose(out2, ref2, atol=TOL, rtol=TOL), float(jnp.max(jnp.abs(out2 - ref2)))

    # Case 3: heads=3 makes inner=192 (not 128-aligned) -> exercises the head_dim
    # zero-padding fallback and the padded-Dout path in linear (3*inner = 576).
    B3, N3, DIM3 = 1, 16, 32
    mod3 = Attention(DIM3, heads=3, head_dim=64, dropout=0.0, key=k_p3)
    x3 = jax.random.normal(k_x3, (B3, N3, DIM3), jnp.float32)
    out3 = jax.block_until_ready(mod3(x3))
    ref3 = reference_forward(mod3, x3)
    assert out3.shape == (B3, N3, DIM3), out3.shape
    assert jnp.allclose(out3, ref3, atol=TOL, rtol=TOL), float(jnp.max(jnp.abs(out3 - ref3)))

    print("KERNEL_OK")
</pallas_src>

<mosaic_0001>
module attributes {stable_mosaic.version = 11 : i64} {
  func.func @_linear_kernel(%arg0: i32, %arg1: i32, %arg2: i32, %arg3: memref<16x32xf32, #tpu.memory_space<vmem>>, %arg4: memref<32x512xbf16, #tpu.memory_space<vmem>>, %arg5: memref<16x512xbf16, #tpu.memory_space<vmem>>, %arg6: memref<16x512xf32, #tpu.memory_space<vmem>>) attributes {dimension_semantics = [#tpu.dimension_semantics<parallel>, #tpu.dimension_semantics<parallel>, #tpu.dimension_semantics<arbitrary>], iteration_bounds = array<i64: 1, 3, 1>, scalar_prefetch = 0 : i64, scratch_operands = 1 : i64, tpu.core_type = #tpu.core_type<tc>, window_params = [{transform_indices = @transform_0, window_bounds = array<i64: 16, 32>}, {transform_indices = @transform_1, window_bounds = array<i64: 32, 512>}, {transform_indices = @transform_2, window_bounds = array<i64: 16, 512>}]} {
    %c0_i32 = arith.constant 0 : i32
    %0 = arith.cmpi eq, %arg2, %c0_i32 : i32
    %1 = arith.extui %0 : i1 to i32
    %c0_i32_0 = arith.constant 0 : i32
    %2 = arith.cmpi ne, %1, %c0_i32_0 : i32
    scf.if %2 {
      %cst_10 = arith.constant 0.000000e+00 : f32
      %13 = vector.broadcast %cst_10 : f32 to vector<16x512xf32>
      %c0_11 = arith.constant 0 : index
      %c0_12 = arith.constant 0 : index
      %14 = vector.load %arg6[%c0_11, %c0_12] : memref<16x512xf32, #tpu.memory_space<vmem>>, vector<16x512xf32>
      tpu.vector_store %arg6[%c0_11, %c0_12], %13 {strides = array<i32>} : memref<16x512xf32, #tpu.memory_space<vmem>>, vector<16x512xf32>,
    } else {
    }
    %c0 = arith.constant 0 : index
    %c0_1 = arith.constant 0 : index
    %3 = vector.load %arg6[%c0, %c0_1] : memref<16x512xf32, #tpu.memory_space<vmem>>, vector<16x512xf32>
    %c0_2 = arith.constant 0 : index
    %c0_3 = arith.constant 0 : index
    %4 = vector.load %arg3[%c0_2, %c0_3] : memref<16x32xf32, #tpu.memory_space<vmem>>, vector<16x32xf32>
    %5 = arith.truncf %4 : vector<16x32xf32> to vector<16x32xbf16>
    %c0_4 = arith.constant 0 : index
    %c0_5 = arith.constant 0 : index
    %6 = vector.load %arg4[%c0_4, %c0_5] : memref<32x512xbf16, #tpu.memory_space<vmem>>, vector<32x512xbf16>
    %cst = arith.constant dense<0.000000e+00> : vector<16x512xf32>
    %7 = tpu.matmul %5, %6, %cst {dimension_numbers = #tpu.dot_dimension_numbers<[1], [0], [0], [1], [0, 0, 1, 1], [], []>} : vector<16x32xbf16>, vector<32x512xbf16>, vector<16x512xf32> -> vector<16x512xf32>
    %8 = arith.addf %3, %7 : vector<16x512xf32>
    %c0_6 = arith.constant 0 : index
    %c0_7 = arith.constant 0 : index
    %9 = vector.load %arg6[%c0_6, %c0_7] : memref<16x512xf32, #tpu.memory_space<vmem>>, vector<16x512xf32>
    tpu.vector_store %arg6[%c0_6, %c0_7], %8 {strides = array<i32>} : memref<16x512xf32, #tpu.memory_space<vmem>>, vector<16x512xf32>,
    %c0_i32_8 = arith.constant 0 : i32
    %10 = arith.cmpi eq, %arg2, %c0_i32_8 : i32
    %11 = arith.extui %10 : i1 to i32
    %c0_i32_9 = arith.constant 0 : i32
    %12 = arith.cmpi ne, %11, %c0_i32_9 : i32
    scf.if %12 {
      %c0_10 = arith.constant 0 : index
      %c0_11 = arith.constant 0 : index
      %13 = vector.load %arg6[%c0_10, %c0_11] : memref<16x512xf32, #tpu.memory_space<vmem>>, vector<16x512xf32>
      %14 = arith.truncf %13 : vector<16x512xf32> to vector<16x512xbf16>
      %c0_12 = arith.constant 0 : index
      %c0_13 = arith.constant 0 : index
      %15 = vector.load %arg5[%c0_12, %c0_13] : memref<16x512xbf16, #tpu.memory_space<vmem>>, vector<16x512xbf16>
      tpu.vector_store %arg5[%c0_12, %c0_13], %14 {strides = array<i32>} : memref<16x512xbf16, #tpu.memory_space<vmem>>, vector<16x512xbf16>,
    } else {
    }
    return
  }
  func.func @transform_0(%arg0: i32, %arg1: i32, %arg2: i32) -> (i32, i32) {
    %c0_i32 = arith.constant 0 : i32
    return %arg0, %arg2 : i32, i32
  }
  func.func @transform_1(%arg0: i32, %arg1: i32, %arg2: i32) -> (i32, i32) {
    %c0_i32 = arith.constant 0 : i32
    return %arg2, %arg1 : i32, i32
  }
  func.func @transform_2(%arg0: i32, %arg1: i32, %arg2: i32) -> (i32, i32) {
    %c0_i32 = arith.constant 0 : i32
    return %arg0, %arg1 : i32, i32
  }
}

</mosaic_0001>

<llo_original>
// kernel: tpu_custom_call.1
$region0: #{tpu_custom_call.1}
  #allocation0 [shape = 'u32[]', space=smem, size = 0x4, offset = 0x4, fixed_abs, tag = 'smem constant byte address 0x4 - core index']
  #allocation1 [shape = 'u32[72,128]{1,0:T(1,128)}', space=vmem, size = 0x9000, scoped, tag = 'internal scratch']
  #allocation2 [shape = 'f32[16,512]{1,0:T(8,128)}', space=vmem, size = 0x8000, scoped, tag = 'scratch operand']
  %s0 = inlined_call_operand.hbm [shape: f32[16,32], index: 0, kind: input, shape index: {}]
  %s1 = inlined_call_operand.hbm [shape: bf16[32,1536], index: 1, kind: input, shape index: {}]
  %s2 = inlined_call_operand.hbm [shape: bf16[16,1536], index: 2, kind: output, shape index: {}]
  %s3 = sld [smem:[#allocation0]]
  $region57: #{tpu_custom_call.1} parent=0
    _
  %s5 = ssub.s32 1, %s3
  %s6 = scalar_select 0, %s5, %s3
  $region1: #{tpu_custom_call.1} parent=0
    #allocation3 [shape = 'u8[8192]{0}', space=vmem, size = 0x2000, scoped, tag = 'input window, operand 0, single buffered']
    #allocation4 [shape = 's32[2]{0}', space=sflag, size = 0x8, scoped, tag = 'scoped memory for tpu_custom_call.1']
    #allocation5 [shape = 's32[2]{0}', space=sflag, size = 0x8, scoped, tag = 'scoped memory for tpu_custom_call.1']
    #allocation6 [shape = 'u8[65536]{0}', space=vmem, size = 0x10000, scoped, tag = 'input window, operand 1']
    #allocation7 [shape = 's32[2]{0}', space=sflag, size = 0x8, scoped, tag = 'scoped memory for tpu_custom_call.1']
    #allocation8 [shape = 'u8[32768]{0}', space=vmem, size = 0x8000, scoped, tag = 'output window, operand 0']
    %7 = vsyncpa [#allocation4], 0
    %8 = vsyncpa [#allocation7], 0
    %s9 = scalar_lea.sflag [#allocation7], 1
    %10 = vsyncpa %s9, 0
    %11 = vsyncpa [#allocation5], 0
    %s12 = scalar_lea.sflag [#allocation5], 1
    %13 = vsyncpa %s12, 0
    loop: start=0, step=1, limit=5
    $region2: #{tpu_custom_call.1} parent=1 // loop_pre_header
      _
    $region3: #{tpu_custom_call.1} parent=1 // loop_header
      %s15 = sphi 0, %s19
      %p16 = scmp.ge.s32.totalorder %s15, 5
      %s22 = sphi 0, %s41
      %s23 = sphi 0, %s37
      %s24 = sphi 0, %s33
      %s25 = sphi 0, %s22
      %s26 = sphi 0, %s23
      %s27 = sphi 0, %s24
      %s28 = sphi 0, %s25
      %s29 = sphi 0, %s26
      %s30 = sphi 0, %s27
      %s46 = sphi 0, %s48
      %s49 = sphi 0, %s46
      %s50 = sphi 0, %s49
      %s66 = sphi 0, %s50
      %s74 = sphi 0, %s76
      %s77 = sphi 0, %s74
      %s78 = sphi 0, %s77
      %s94 = sphi 0, %s78
      %s102 = sphi 0, %s104
      %s105 = sphi 0, %s102
      %s106 = sphi 0, %s105
      %s122 = sphi 0, %s106
    $region4: #{tpu_custom_call.1} parent=1 // loop_header_branch
      %18 = sbr.rel (%p16) target = $region8
    $region5: #{tpu_custom_call.1} parent=1 // loop_body
      %s20 = ssub.s32 %s15, 1
      %s21 = ssub.s32 %s15, 2
      %s31 = sadd.s32 1, %s24
      %p32 = scmp.ge.s32.totalorder %s31, 1
      %s33 = scalar_select %p32, 0, %s31
      %s34 = sadd.s32 1, %s23
      %s35 = scalar_select %p32, %s34, %s23
      %p36 = scmp.ge.s32.totalorder %s35, 3
      %s37 = scalar_select %p36, 0, %s35
      %s38 = sadd.s32 1, %s22
      %s39 = scalar_select %p36, %s38, %s22
      %p40 = scmp.ge.s32.totalorder %s39, 1
      %s41 = scalar_select %p40, 0, %s39
      %s42 = ssub.s32 %s22, %s41
      %s43 = ssub.s32 %s24, %s33
      %s44 = sor.u32 %s42, %s43
      %p45 = scmp.eq.s32.totalorder %s44, 0
      %s47 = sadd.s32 %s46, 1
      %s48 = scalar_select %p45, %s46, %s47
      %p51 = pneg %p45
      %p52 = scmp.eq.s32.totalorder %s15, 2
      %p53 = por %p51, %p52
      %p54 = scmp.ne.s32.totalorder %s46, %s49
      %p55 = scmp.eq.s32.totalorder %s15, 0
      %p56 = por %p54, %p55
      %p57 = scmp.ne.s32.totalorder %s46, %s49
      %p58 = scmp.eq.s32.totalorder %s20, 2
      %p59 = por %p57, %p58
      %p60 = scmp.ne.s32.totalorder %s49, %s50
      %p61 = scmp.eq.s32.totalorder %s20, 0
      %p62 = por %p60, %p61
      %p63 = scmp.ne.s32.totalorder %s49, %s50
      %p64 = scmp.eq.s32.totalorder %s21, 2
      %p65 = por %p63, %p64
      %p67 = scmp.ne.s32.totalorder %s50, %s66
      %p68 = scmp.eq.s32.totalorder %s21, 0
      %p69 = por %p67, %p68
      %s70 = ssub.s32 %s24, %s33
      %s71 = ssub.s32 %s23, %s37
      %s72 = sor.u32 %s70, %s71
      %p73 = scmp.eq.s32.totalorder %s72, 0
      %s75 = sadd.s32 %s74, 1
      %s76 = scalar_select %p73, %s74, %s75
      %p79 = pneg %p73
      %p80 = scmp.eq.s32.totalorder %s15, 2
      %p81 = por %p79, %p80
      %p82 = scmp.ne.s32.totalorder %s74, %s77
      %p83 = scmp.eq.s32.totalorder %s15, 0
      %p84 = por %p82, %p83
      %p85 = scmp.ne.s32.totalorder %s74, %s77
      %p86 = scmp.eq.s32.totalorder %s20, 2
      %p87 = por %p85, %p86
      %p88 = scmp.ne.s32.totalorder %s77, %s78
      %p89 = scmp.eq.s32.totalorder %s20, 0
      %p90 = por %p88, %p89
      %p91 = scmp.ne.s32.totalorder %s77, %s78
      %p92 = scmp.eq.s32.totalorder %s21, 2
      %p93 = por %p91, %p92
      %p95 = scmp.ne.s32.totalorder %s78, %s94
      %p96 = scmp.eq.s32.totalorder %s21, 0
      %p97 = por %p95, %p96
      %s98 = ssub.s32 %s22, %s41
      %s99 = ssub.s32 %s23, %s37
      %s100 = sor.u32 %s98, %s99
      %p101 = scmp.eq.s32.totalorder %s100, 0
      %s103 = sadd.s32 %s102, 1
      %s104 = scalar_select %p101, %s102, %s103
      %p107 = pneg %p101
      %p108 = scmp.eq.s32.totalorder %s15, 2
      %p109 = por %p107, %p108
      %p110 = scmp.ne.s32.totalorder %s102, %s105
      %p111 = scmp.eq.s32.totalorder %s15, 0
      %p112 = por %p110, %p111
      %p113 = scmp.ne.s32.totalorder %s102, %s105
      %p114 = scmp.eq.s32.totalorder %s20, 2
      %p115 = por %p113, %p114
      %p116 = scmp.ne.s32.totalorder %s105, %s106
      %p117 = scmp.eq.s32.totalorder %s20, 0
      %p118 = por %p116, %p117
      %p119 = scmp.ne.s32.totalorder %s105, %s106
      %p120 = scmp.eq.s32.totalorder %s21, 2
      %p121 = por %p119, %p120
      %p123 = scmp.ne.s32.totalorder %s106, %s122
      %p124 = scmp.eq.s32.totalorder %s21, 0
      %p125 = por %p123, %p124
      %p126 = scmp.le.s32.totalorder 1, %s15
      %p127 = scmp.lt.s32.totalorder %s15, 4
      %p128 = pnand %p126, %p127
      %p129 = pneg %p128
      // Predicated region
      $region9: #{tpu_custom_call.1} parent=5 // pred_check
        _
      $region10: #{tpu_custom_call.1} parent=5 // pred_check_branch
        %131 = sbr.rel (%p128) target = $region12
      $region11: #{tpu_custom_call.1} parent=5 // pred_region
        %s132 = ssub.s32 %s15, 1
        // Predicated region
        $region13: #{tpu_custom_call.1} parent=11 // pred_check
          %p133 = pneg %p62
        $region14: #{tpu_custom_call.1} parent=11 // pred_check_branch
          %135 = sbr.rel (%p133) target = $region16
        $region15: #{tpu_custom_call.1} parent=11 // pred_region
          %s136 = smul.u32 2, %s25
          %138 = vsyncadd [#allocation4], 0
          %s139 = sadd.s32 %s27, %s136
          %s140 = smul.addr %s139, 8
          %s141 = scalar_lea.hbm %s0, %s140
          %s142 = sshll.u32 %s141, 4
          %s143 = int_to_ptr.hbm [resolvable:$true] %s142
          %s144 = sshll.u32 [#allocation3], 4
          %s145 = int_to_ptr.vmem [resolvable:$true] %s144
          %150 = dma.hbm_to_vmem [thread:$0]  %s143, 256, %s145, [#allocation4], 128, 128, 8
        $region16: #{tpu_custom_call.1} parent=11 // pred_fallthru
          _
      $region12: #{tpu_custom_call.1} parent=5 // pred_fallthru
        _
      %p151 = scmp.lt.s32.totalorder %s15, 3
      // Predicated region
      $region17: #{tpu_custom_call.1} parent=5 // pred_check
        %p152 = pneg %p151
      $region18: #{tpu_custom_call.1} parent=5 // pred_check_branch
        %154 = sbr.rel (%p152) target = $region20
      $region19: #{tpu_custom_call.1} parent=5 // pred_region
        // Predicated region
        $region21: #{tpu_custom_call.1} parent=19 // pred_check
          %p155 = pneg %p84
        $region22: #{tpu_custom_call.1} parent=19 // pred_check_branch
          %157 = sbr.rel (%p155) target = $region24
        $region23: #{tpu_custom_call.1} parent=19 // pred_region
          %s158 = sand.u32 %s74, 1
          %s159 = scalar_lea.sflag [#allocation7], %s158
          %s160 = sand.u32 %s74, 1
          %s161 = smul.addr %s160, 64
          %s162 = scalar_lea.vmem [#allocation6], %s161
          %s163 = smul.u32 4, %s24
          %s164 = smul.u32 4, %s23
          %166 = vsyncadd %s159, 0
          %s167 = smul.addr %s163, 12
          %s168 = sadd.s32 %s164, %s167
          %s169 = smul.addr %s168, 4
          %s170 = scalar_lea.hbm %s1, %s169
          %s171 = sshll.u32 %s170, 4
          %s172 = int_to_ptr.hbm [resolvable:$true] %s171
          %s173 = sshll.u32 %s162, 4
          %s174 = int_to_ptr.vmem [resolvable:$true] %s173
          %179 = dma.hbm_to_vmem [thread:$0]  %s172, 1024, %s174, %s159, 768, 256, 16
        $region24: #{tpu_custom_call.1} parent=19 // pred_fallthru
          _
      $region20: #{tpu_custom_call.1} parent=5 // pred_fallthru
        _
      %p180 = scmp.le.s32.totalorder 1, %s15
      %p181 = scmp.lt.s32.totalorder %s15, 4
      %p182 = pnand %p180, %p181
      %p183 = pneg %p182
      // Predicated region
      $region25: #{tpu_custom_call.1} parent=5 // pred_check
        _
      $region26: #{tpu_custom_call.1} parent=5 // pred_check_branch
        %185 = sbr.rel (%p182) target = $region28
      $region27: #{tpu_custom_call.1} parent=5 // pred_region
        %s186 = ssub.s32 %s15, 1
        // Predicated region
        $region29: #{tpu_custom_call.1} parent=27 // pred_check
          %p187 = pneg %p62
        $region30: #{tpu_custom_call.1} parent=27 // pred_check_branch
          %189 = sbr.rel (%p187) target = $region32
        $region31: #{tpu_custom_call.1} parent=27 // pred_region
          %191 = dma.done [#allocation4], 256
        $region32: #{tpu_custom_call.1} parent=27 // pred_fallthru
          _
        %s192 = sand.u32 %s77, 1
        %s193 = scalar_lea.sflag [#allocation7], %s192
        %s194 = sand.u32 %s77, 1
        %s195 = smul.addr %s194, 64
        %s196 = scalar_lea.vmem [#allocation6], %s195
        // Predicated region
        $region33: #{tpu_custom_call.1} parent=27 // pred_check
          %p197 = pneg %p90
        $region34: #{tpu_custom_call.1} parent=27 // pred_check_branch
          %199 = sbr.rel (%p197) target = $region36
        $region35: #{tpu_custom_call.1} parent=27 // pred_region
          %201 = dma.done %s193, 1024
        $region36: #{tpu_custom_call.1} parent=27 // pred_fallthru
          _
        %p202 = pneg %p62
        %p203 = pneg %p59
        %s204 = sand.u32 %s77, 1
        %s205 = scalar_lea.sflag [#allocation7], %s204
        %s206 = sand.u32 %s77, 1
        %s207 = smul.addr %s206, 64
        %s208 = scalar_lea.vmem [#allocation6], %s207
        %p209 = pneg %p90
        %p210 = pneg %p87
        %p211 = pneg %p118
        %p212 = pneg %p115
        %s213 = sand.u32 %s105, 1
        %s214 = scalar_lea.sflag [#allocation5], %s213
        %s215 = sand.u32 %s105, 1
        %s216 = smul.addr %s215, 32
        %s217 = scalar_lea.vmem [#allocation8], %s216
        %s218 = smul.u32 2, %s25
        %s219 = smul.u32 4, %s27
        %s220 = smul.u32 4, %s26
        %s221 = smul.u32 2, %s25
        %s222 = smul.u32 4, %s26
        %p224 = scmp.eq.s32.totalorder %s27, 0
        // Predicated region
        $region37: #{tpu_custom_call.1} parent=27 // pred_check
          %p225 = pneg %p224
        $region38: #{tpu_custom_call.1} parent=27 // pred_check_branch
          %227 = sbr.rel (%p225) target = $region40
        $region39: #{tpu_custom_call.1} parent=27 // pred_region
          %228 = vst [vmem:[#allocation2] sm:$0xff] 0.0
          %229 = vst [vmem:[#allocation2 + $0x8] sm:$0xff] 0.0
          %230 = vst [vmem:[#allocation2 + $0x10] sm:$0xff] 0.0
          %231 = vst [vmem:[#allocation2 + $0x18] sm:$0xff] 0.0
          %232 = vst [vmem:[#allocation2 + $0x20] sm:$0xff] 0.0
          %233 = vst [vmem:[#allocation2 + $0x28] sm:$0xff] 0.0
          %234 = vst [vmem:[#allocation2 + $0x30] sm:$0xff] 0.0
          %235 = vst [vmem:[#allocation2 + $0x38] sm:$0xff] 0.0
        $region40: #{tpu_custom_call.1} parent=27 // pred_fallthru
          _
        %v236 = vld [vmem:[#allocation2] sm:$0xff]
        %v237 = vld [vmem:[#allocation2 + $0x8] sm:$0xff]
        %v238 = vld [vmem:[#allocation2 + $0x10] sm:$0xff]
        %v239 = vld [vmem:[#allocation2 + $0x18] sm:$0xff]
        %v240 = vld [vmem:[#allocation2 + $0x20] sm:$0xff]
        %v241 = vld [vmem:[#allocation2 + $0x28] sm:$0xff]
        %v242 = vld [vmem:[#allocation2 + $0x30] sm:$0xff]
        %v243 = vld [vmem:[#allocation2 + $0x38] sm:$0xff]
        %v244 = vld [vmem:[#allocation3] sm:$0xff]
        %v245 = vld [vmem:[#allocation3 + $0x8] sm:$0xff]
        %v246 = vpack.c.bf16 %v245, %v244
        %v247 = vld [vmem:[%s196] sm:$0xff]
        %v248 = vld [vmem:[%s196 + $0x8] sm:$0xff]
        %v249 = vld [vmem:[%s196 + $0x10] sm:$0xff]
        %v250 = vld [vmem:[%s196 + $0x18] sm:$0xff]
        %v251 = vld [vmem:[%s196 + $0x20] sm:$0xff]
        %v252 = vld [vmem:[%s196 + $0x28] sm:$0xff]
        %v253 = vld [vmem:[%s196 + $0x30] sm:$0xff]
        %v254 = vld [vmem:[%s196 + $0x38] sm:$0xff]
        %v263 = vunpack.c.l.b16 %v247
        %v264 = vunpack.c.h.b16 %v247
        %v265 = vunpack.c.l.b16 %v248
        %v266 = vunpack.c.h.b16 %v248
        %v267 = vunpack.c.l.b16 %v249
        %v268 = vunpack.c.h.b16 %v249
        %v269 = vunpack.c.l.b16 %v250
        %v270 = vunpack.c.h.b16 %v250
        %v271 = vunpack.c.l.b16 %v251
        %v272 = vunpack.c.h.b16 %v251
        %v273 = vunpack.c.l.b16 %v252
        %v274 = vunpack.c.h.b16 %v252
        %v275 = vunpack.c.l.b16 %v253
        %v276 = vunpack.c.h.b16 %v253
        %v277 = vunpack.c.l.b16 %v254
        %v278 = vunpack.c.h.b16 %v254
        %v279 = vpack.c.b16 %v267, %v263
        %v280 = vpack.c.b16 %v268, %v264
        %v281 = vpack.c.b16 %v269, %v265
        %v282 = vpack.c.b16 %v270, %v266
        %v283 = vpack.c.b16 %v275, %v271
        %v284 = vpack.c.b16 %v276, %v272
        %v285 = vpack.c.b16 %v277, %v273
        %v286 = vpack.c.b16 %v278, %v274
        %vm295 = vcmask 261120
        %v297 = vsel %vm295, %v246, 0
        %299 = vmatpush.bf16.msra.mxu0 0
        %300 = vmatpush.bf16.msra.mxu0 0
        %301 = vmatpush.bf16.msra.mxu0 0
        %302 = vmatpush.bf16.msra.mxu0 0
        %303 = vmatpush.bf16.msra.mxu0 0
        %304 = vmatpush.bf16.msra.mxu0 0
        %305 = vmatpush.bf16.msra.mxu0 %v283
        %306 = vmatpush.bf16.msra.mxu0 %v279
        %307 = vmatmul.bf16.gmra.mxu0 %v297
        %v308 = vpop.f32.mrf.mxu0
        %v309 = vadd.f32 0.0, %v308
        %v310 = vpop.f32.mrf.mxu0
        %v311 = vadd.f32 0.0, %v310
        %312 = vdwg.mxu0
        %313 = vmatpush.bf16.msra.mxu0 0
        %314 = vmatpush.bf16.msra.mxu0 0
        %315 = vmatpush.bf16.msra.mxu0 0
        %316 = vmatpush.bf16.msra.mxu0 0
        %317 = vmatpush.bf16.msra.mxu0 0
        %318 = vmatpush.bf16.msra.mxu0 0
        %319 = vmatpush.bf16.msra.mxu0 %v284
        %320 = vmatpush.bf16.msra.mxu0 %v280
        %321 = vmatmul.bf16.gmra.mxu0 %v297
        %v322 = vpop.f32.mrf.mxu0
        %v323 = vadd.f32 0.0, %v322
        %v324 = vpop.f32.mrf.mxu0
        %v325 = vadd.f32 0.0, %v324
        %326 = vdwg.mxu0
        %327 = vmatpush.bf16.msra.mxu0 0
        %328 = vmatpush.bf16.msra.mxu0 0
        %329 = vmatpush.bf16.msra.mxu0 0
        %330 = vmatpush.bf16.msra.mxu0 0
        %331 = vmatpush.bf16.msra.mxu0 0
        %332 = vmatpush.bf16.msra.mxu0 0
        %333 = vmatpush.bf16.msra.mxu0 %v285
        %334 = vmatpush.bf16.msra.mxu0 %v281
        %335 = vmatmul.bf16.gmra.mxu0 %v297
        %v336 = vpop.f32.mrf.mxu0
        %v337 = vadd.f32 0.0, %v336
        %v338 = vpop.f32.mrf.mxu0
        %v339 = vadd.f32 0.0, %v338
        %340 = vdwg.mxu0
        %341 = vmatpush.bf16.msra.mxu0 0
        %342 = vmatpush.bf16.msra.mxu0 0
        %343 = vmatpush.bf16.msra.mxu0 0
        %344 = vmatpush.bf16.msra.mxu0 0
        %345 = vmatpush.bf16.msra.mxu0 0
        %346 = vmatpush.bf16.msra.mxu0 0
        %347 = vmatpush.bf16.msra.mxu0 %v286
        %348 = vmatpush.bf16.msra.mxu0 %v282
        %349 = vmatmul.bf16.gmra.mxu0 %v297
        %v350 = vpop.f32.mrf.mxu0
        %v351 = vadd.f32 0.0, %v350
        %v352 = vpop.f32.mrf.mxu0
        %v353 = vadd.f32 0.0, %v352
        %354 = vdwg.mxu0
        %v355 = vadd.f32 %v236, %v309
        %v356 = vadd.f32 %v237, %v323
        %v357 = vadd.f32 %v238, %v337
        %v358 = vadd.f32 %v239, %v351
        %v359 = vadd.f32 %v240, %v311
        %v360 = vadd.f32 %v241, %v325
        %v361 = vadd.f32 %v242, %v339
        %v362 = vadd.f32 %v243, %v353
        %363 = vst [vmem:[#allocation2] sm:$0xff] %v355
        %364 = vst [vmem:[#allocation2 + $0x8] sm:$0xff] %v356
        %365 = vst [vmem:[#allocation2 + $0x10] sm:$0xff] %v357
        %366 = vst [vmem:[#allocation2 + $0x18] sm:$0xff] %v358
        %367 = vst [vmem:[#allocation2 + $0x20] sm:$0xff] %v359
        %368 = vst [vmem:[#allocation2 + $0x28] sm:$0xff] %v360
        %369 = vst [vmem:[#allocation2 + $0x30] sm:$0xff] %v361
        %370 = vst [vmem:[#allocation2 + $0x38] sm:$0xff] %v362
        // Predicated region
        $region41: #{tpu_custom_call.1} parent=27 // pred_check
          %p371 = pneg %p224
        $region42: #{tpu_custom_call.1} parent=27 // pred_check_branch
          %373 = sbr.rel (%p371) target = $region44
        $region43: #{tpu_custom_call.1} parent=27 // pred_region
          %v374 = vld [vmem:[#allocation2] sm:$0xff]
          %v375 = vld [vmem:[#allocation2 + $0x8] sm:$0xff]
          %v376 = vld [vmem:[#allocation2 + $0x10] sm:$0xff]
          %v377 = vld [vmem:[#allocation2 + $0x18] sm:$0xff]
          %v378 = vld [vmem:[#allocation2 + $0x20] sm:$0xff]
          %v379 = vld [vmem:[#allocation2 + $0x28] sm:$0xff]
          %v380 = vld [vmem:[#allocation2 + $0x30] sm:$0xff]
          %v381 = vld [vmem:[#allocation2 + $0x38] sm:$0xff]
          %v382 = vpack.c.bf16 %v375, %v374
          %v383 = vpack.c.bf16 %v377, %v376
          %v384 = vpack.c.bf16 %v379, %v378
          %v385 = vpack.c.bf16 %v381, %v380
          %386 = vst [vmem:[%s217] sm:$0xff] %v382
          %387 = vst [vmem:[%s217 + $0x8] sm:$0xff] %v383
          %388 = vst [vmem:[%s217 + $0x10] sm:$0xff] %v384
          %389 = vst [vmem:[%s217 + $0x18] sm:$0xff] %v385
        $region44: #{tpu_custom_call.1} parent=27 // pred_fallthru
          _
        %s390 = sand.u32 %s105, 1
        %s391 = scalar_lea.sflag [#allocation5], %s390
        %s392 = sand.u32 %s105, 1
        %s393 = smul.addr %s392, 32
        %s394 = scalar_lea.vmem [#allocation8], %s393
        // Predicated region
        $region45: #{tpu_custom_call.1} parent=27 // pred_check
          %p395 = pneg %p115
        $region46: #{tpu_custom_call.1} parent=27 // pred_check_branch
          %397 = sbr.rel (%p395) target = $region48
        $region47: #{tpu_custom_call.1} parent=27 // pred_region
          %s398 = smul.u32 2, %s25
          %s399 = smul.u32 4, %s26
          %401 = vsyncadd %s391, 0
          %s402 = smul.addr %s398, 12
          %s403 = sadd.s32 %s399, %s402
          %s404 = smul.addr %s403, 4
          %s405 = scalar_lea.hbm %s2, %s404
          %s406 = sshll.u32 %s394, 4
          %s407 = int_to_ptr.vmem [resolvable:$true] %s406
          %s408 = sshll.u32 %s405, 4
          %s409 = int_to_ptr.hbm [resolvable:$true] %s408
          %414 = dma.vmem_to_hbm [thread:$0]  %s407, 512, %s409, %s391, 256, 768, 16
        $region48: #{tpu_custom_call.1} parent=27 // pred_fallthru
          _
      $region28: #{tpu_custom_call.1} parent=5 // pred_fallthru
        _
      %p415 = scmp.le.s32.totalorder 2, %s15
      // Predicated region
      $region49: #{tpu_custom_call.1} parent=5 // pred_check
        %p416 = pneg %p415
      $region50: #{tpu_custom_call.1} parent=5 // pred_check_branch
        %418 = sbr.rel (%p416) target = $region52
      $region51: #{tpu_custom_call.1} parent=5 // pred_region
        %s419 = ssub.s32 %s15, 2
        // Predicated region
        $region53: #{tpu_custom_call.1} parent=51 // pred_check
          %p420 = pneg %p121
        $region54: #{tpu_custom_call.1} parent=51 // pred_check_branch
          %422 = sbr.rel (%p420) target = $region56
        $region55: #{tpu_custom_call.1} parent=51 // pred_region
          %s423 = sand.u32 %s106, 1
          %s424 = scalar_lea.sflag [#allocation5], %s423
          %s425 = sand.u32 %s106, 1
          %s426 = smul.addr %s425, 32
          %s427 = scalar_lea.vmem [#allocation8], %s426
          %429 = dma.done %s424, 512
        $region56: #{tpu_custom_call.1} parent=51 // pred_fallthru
          _
      $region52: #{tpu_custom_call.1} parent=5 // pred_fallthru
        _
    $region6: #{tpu_custom_call.1} parent=1 // loop_footer
      %s19 = sadd.s32 1, %s15
    $region7: #{tpu_custom_call.1} parent=1 // loop_footer_branch
      %14 = sbr.rel target = $region3
    $region8: #{tpu_custom_call.1} parent=1 // loop_exit
      _
    %430 = vsyncpa [#allocation4], 1
    %s431 = scalar_lea.sflag [#allocation4], 1
    %432 = vsyncpa %s431, 1
    %433 = vsyncpa [#allocation7], 1
    %s434 = scalar_lea.sflag [#allocation7], 1
    %435 = vsyncpa %s434, 1
    %436 = vsyncpa [#allocation5], 1
    %s437 = scalar_lea.sflag [#allocation5], 1
    %438 = vsyncpa %s437, 1

</llo_original>
